<compile_context>
chip_gen: v6e
topology: v6e:2x2x1
jax: 0.10.0
libtpu: 0.0.40
codegen_flags: <defaults>
</compile_context>

<pallas_src>
import functools

import jax
import jax.numpy as jnp
from jax.experimental import pallas as pl
from jax.experimental.pallas import tpu as pltpu


def _detect_vmem_limit():
    """Chip-aware VMEM budget: ~3/4 of physical VMEM, leaving headroom for
    compiler scratch (≈96 MiB on 128 MiB v5e/v6e, ≈48 MiB on 64 MiB v7x)."""
    try:
        cap = pltpu.get_tpu_info().vmem_capacity_bytes
    except Exception:
        cap = 64 * 1024 * 1024            # conservative (v7x-sized) fallback
    return int(min(cap * 3 // 4, 110 * 1024 * 1024))


VMEM_LIMIT_BYTES = _detect_vmem_limit()


def _largest_divisor_leq(n, cap):
    cap = int(max(1, min(n, cap)))
    for d in range(cap, 0, -1):
        if n % d == 0:
            return d
    return 1


def _seq_tile(n, cap):
    """Divisor of n that is <= cap and a multiple of 8 (sublane), else full n
    (full-dim blocks are always legal and avoid padded softmax columns)."""
    if n <= cap:
        return n
    for d in range(int(cap), 7, -1):
        if n % d == 0 and d % 8 == 0:
            return d
    return n


def _resident_spec(shape):
    """BlockSpec for an operand whose block never changes across the grid
    (weights / biases): constant index map + single buffer (Buffered(1)) so it
    is DMA'd once and does not pay a useless second VMEM buffer."""
    index_map = lambda *_: (0,) * len(shape)
    try:
        return pl.BlockSpec(shape, index_map, pipeline_mode=pl.Buffered(1))
    except TypeError:  # older jax without pipeline_mode on BlockSpec
        return pl.BlockSpec(shape, index_map)


# ---------------------------------------------------------------------------
# Kernel 1: fused Q/K/V projections  ( [TN,D] @ [D,D] + b , three times )
# ---------------------------------------------------------------------------
def _qkv_kernel(x_ref, wq_ref, bq_ref, wk_ref, bk_ref, wv_ref, bv_ref,
                q_ref, k_ref, v_ref):
    x = x_ref[...]                                    # bf16 [TN, D]
    q_ref[...] = (jnp.dot(x, wq_ref[...], preferred_element_type=jnp.float32)
                  + bq_ref[...]).astype(q_ref.dtype)
    k_ref[...] = (jnp.dot(x, wk_ref[...], preferred_element_type=jnp.float32)
                  + bk_ref[...]).astype(k_ref.dtype)
    v_ref[...] = (jnp.dot(x, wv_ref[...], preferred_element_type=jnp.float32)
                  + bv_ref[...]).astype(v_ref.dtype)


def qkv_proj(x2d_bf16, wq, bq, wk, bk, wv, bv, *, row_tile=512):
    N, D = x2d_bf16.shape
    tn = N if N <= row_tile else row_tile            # row tile (weights resident)
    grid = (pl.cdiv(N, tn),)
    spec_x = pl.BlockSpec((tn, D), lambda i: (i, 0))
    spec_w = _resident_spec((D, D))                   # DMA'd once, single buffer
    spec_b = _resident_spec((1, D))
    out_spec = pl.BlockSpec((tn, D), lambda i: (i, 0))
    # TODO(synk): for very large D, add a grid axis over output columns so each
    # step only holds [D, tile] weight slices (footprint independent of D).
    return pl.pallas_call(
        _qkv_kernel,
        grid=grid,
        in_specs=[spec_x, spec_w, spec_b, spec_w, spec_b, spec_w, spec_b],
        out_specs=(out_spec, out_spec, out_spec),
        out_shape=(jax.ShapeDtypeStruct((N, D), jnp.bfloat16),) * 3,
        compiler_params=pltpu.CompilerParams(
            dimension_semantics=("parallel",),
            vmem_limit_bytes=VMEM_LIMIT_BYTES),
    )(x2d_bf16, wq, bq, wk, bk, wv, bv)


# ---------------------------------------------------------------------------
# Kernel 2: flash-style scaled dot-product attention.
# Grid = (head blocks, q tiles, kv tiles); online softmax with m/l/acc in VMEM
# scratch, normalization deferred to the finalize step. q arrives pre-scaled.
# ---------------------------------------------------------------------------
def _attn_kernel(q_ref, k_ref, v_ref, o_ref, m_sc, l_sc, acc_sc):
    kv = pl.program_id(2)

    @pl.when(kv == 0)
    def _():
        m_sc[...] = jnp.full(m_sc.shape, -jnp.inf, m_sc.dtype)
        l_sc[...] = jnp.zeros(l_sc.shape, l_sc.dtype)
        acc_sc[...] = jnp.zeros(acc_sc.shape, acc_sc.dtype)

    # Batched contraction over the last dims -- no materialized k.T transpose.
    s = jnp.einsum("bqd,bkd->bqk", q_ref[...], k_ref[...],
                   preferred_element_type=jnp.float32)          # [hb,tq,tk] f32
    m_prev = m_sc[...]
    m_new = jnp.maximum(m_prev, jnp.max(s, axis=-1, keepdims=True))
    alpha = jnp.exp(m_prev - m_new)                              # [hb,tq,1]
    # TODO(synk): on v6e/v7x the EUP supports bf16 exp; could compute exp on
    # bf16 (s - m_new) to ~double transcendental throughput for small dh.
    e = jnp.exp(s - m_new)                                       # [hb,tq,tk] f32
    l_sc[...] = alpha * l_sc[...] + jnp.sum(e, axis=-1, keepdims=True)
    acc_sc[...] = alpha * acc_sc[...] + jnp.einsum(
        "bqk,bkd->bqd", e.astype(jnp.bfloat16), v_ref[...],
        preferred_element_type=jnp.float32)
    m_sc[...] = m_new

    @pl.when(kv == pl.num_programs(2) - 1)
    def _():
        # Deferred softmax normalization: one O(tq*dh) multiply instead of an
        # O(tq*tk) rescale of the probability block; reciprocal runs on EUP.
        o_ref[...] = (acc_sc[...] *
                      pl.reciprocal(l_sc[...], approx=True)).astype(o_ref.dtype)


def attention(qh, kh, vh, *, q_tile=512, kv_tile=1024):
    BH, L, dh = qh.shape
    tq = _seq_tile(L, q_tile)
    tk = _seq_tile(L, kv_tile)

    # Heads per block: heads are independent batched matmuls (they do not
    # "fill" the MXU), so the only cap is the VMEM footprint per grid step.
    per_head_bytes = (
        2 * tq * tk * 4                   # s and exp(s-m) f32 temporaries
        + 2 * 2 * (tq + 2 * tk) * dh      # q/k/v bf16 blocks, double-buffered
        + tq * dh * (2 * 2 + 4)           # o bf16 (x2 buffers) + f32 acc scratch
        + 4 * tq * 4                      # m/l scratch (+ slack)
    )
    hb_cap = max(1, (VMEM_LIMIT_BYTES // 2) // per_head_bytes)
    hb = _largest_divisor_leq(BH, hb_cap)

    grid = (BH // hb, L // tq, L // tk)
    q_spec = pl.BlockSpec((hb, tq, dh), lambda i, j, k: (i, j, 0))
    kv_spec = pl.BlockSpec((hb, tk, dh), lambda i, j, k: (i, 0, k))
    # TODO(synk): dh < 128 makes this output lane-sparse (masked stores); a
    # lane-dense [N, D] context output requires fusing QKV proj + attention.
    o_spec = pl.BlockSpec((hb, tq, dh), lambda i, j, k: (i, j, 0))
    return pl.pallas_call(
        _attn_kernel,
        grid=grid,
        in_specs=[q_spec, kv_spec, kv_spec],
        out_specs=o_spec,
        out_shape=jax.ShapeDtypeStruct((BH, L, dh), jnp.bfloat16),
        scratch_shapes=[pltpu.VMEM((hb, tq, 1), jnp.float32),   # m
                        pltpu.VMEM((hb, tq, 1), jnp.float32),   # l
                        pltpu.VMEM((hb, tq, dh), jnp.float32)], # acc
        compiler_params=pltpu.CompilerParams(
            dimension_semantics=("parallel", "parallel", "arbitrary"),
            vmem_limit_bytes=VMEM_LIMIT_BYTES),
    )(qh, kh, vh)


# ---------------------------------------------------------------------------
# Kernel 3: output projection + residual add + LayerNorm (row-tiled)
# ---------------------------------------------------------------------------
def _out_kernel(ctx_ref, x_ref, wo_ref, bo_ref, g_ref, b_ref, o_ref, *, eps):
    out = jnp.dot(ctx_ref[...], wo_ref[...],
                  preferred_element_type=jnp.float32) + bo_ref[...]
    # Dropout is identity here (p=0.0 / eval mode), so omitted.
    out = out + x_ref[...]                                   # residual (f32)
    mean = jnp.mean(out, axis=-1, keepdims=True)
    var = jnp.mean(jnp.square(out - mean), axis=-1, keepdims=True)  # biased, like torch LN
    out = (out - mean) * jax.lax.rsqrt(var + eps)
    o_ref[...] = (out * g_ref[...] + b_ref[...]).astype(o_ref.dtype)


def out_proj_ln(ctx2d_bf16, x2d_f32, wo, bo, gamma, beta, *, eps=1e-5, row_tile=512):
    N, D = ctx2d_bf16.shape
    tn = N if N <= row_tile else row_tile
    grid = (pl.cdiv(N, tn),)
    spec_ctx = pl.BlockSpec((tn, D), lambda i: (i, 0))
    # TODO(synk): residual kept f32 for strict parity; could pass bf16 to halve
    # one activation-sized HBM read if looser numerics are acceptable.
    spec_x = pl.BlockSpec((tn, D), lambda i: (i, 0))
    spec_w = _resident_spec((D, D))
    spec_b = _resident_spec((1, D))
    return pl.pallas_call(
        functools.partial(_out_kernel, eps=eps),
        grid=grid,
        in_specs=[spec_ctx, spec_x, spec_w, spec_b, spec_b, spec_b],
        out_specs=pl.BlockSpec((tn, D), lambda i: (i, 0)),
        out_shape=jax.ShapeDtypeStruct((N, D), jnp.float32),
        compiler_params=pltpu.CompilerParams(
            dimension_semantics=("parallel",),
            vmem_limit_bytes=VMEM_LIMIT_BYTES),
    )(ctx2d_bf16, x2d_f32, wo, bo, gamma, beta)


# ---------------------------------------------------------------------------
# Full forward (wrapper = reshape / dtype-cast / param-prep glue only)
# ---------------------------------------------------------------------------
def multi_head_attention_forward(x, params, num_head):
    B, L, D = x.shape
    assert D % num_head == 0
    dh = D // num_head
    x2d = x.reshape(B * L, D)
    x2d_bf16 = x2d.astype(jnp.bfloat16)

    # Pre-fold the softmax scale (dh ** -0.5) into the Q projection once at
    # parameter-prep time -- removes per-tile scale multiplies/casts in the
    # attention hot path.
    scale = float(dh) ** (-0.5)
    wq = (params["wq_t"] * scale).astype(jnp.bfloat16)
    bq = params["bq"] * scale
    wk = params["wk_t"].astype(jnp.bfloat16)
    wv = params["wv_t"].astype(jnp.bfloat16)
    wo = params["wo_t"].astype(jnp.bfloat16)

    q2d, k2d, v2d = qkv_proj(x2d_bf16, wq, bq,
                             wk, params["bk"],
                             wv, params["bv"])

    # Reproduce PyTorch's .view(B*num_head, -1, dim_head) exactly (row-major
    # reshape, NOT a head transpose).
    # TODO(synk): these reshapes change the lane dim (D -> dh), so XLA inserts
    # HBM relayout copies for Q/K/V and ctx; eliminating them requires fusing
    # QKV projection + attention in one pallas_call with the head-view reshape
    # done in VMEM (sub-tile minor-dim reshapes are not reliably lowerable by
    # Mosaic at small dh, so they are kept outside the kernels for now).
    qh = q2d.reshape(B * num_head, L, dh)
    kh = k2d.reshape(B * num_head, L, dh)
    vh = v2d.reshape(B * num_head, L, dh)

    ctx = attention(qh, kh, vh)                      # [B*H, L, dh] bf16
    ctx2d = ctx.reshape(B * L, D)                    # == .view(B, -1, H*dh)

    out2d = out_proj_ln(ctx2d, x2d, wo, params["bo"],
                        params["ln_g"], params["ln_b"])
    return out2d.reshape(B, L, D)


# ---------------------------------------------------------------------------
# Pure-JAX f32 reference (mirrors the PyTorch code) for a sanity check
# ---------------------------------------------------------------------------
def reference_forward(x, params, num_head):
    B, L, D = x.shape
    dh = D // num_head
    Q = x @ params["wq_t"] + params["bq"][0]
    K = x @ params["wk_t"] + params["bk"][0]
    V = x @ params["wv_t"] + params["bv"][0]
    Q = Q.reshape(B * num_head, -1, dh)
    K = K.reshape(B * num_head, -1, dh)
    V = V.reshape(B * num_head, -1, dh)
    scale = float(dh) ** (-0.5)
    att = jnp.einsum("bld,bmd->blm", Q, K) * scale
    att = jax.nn.softmax(att, axis=-1)
    ctx = jnp.einsum("blm,bmd->bld", att, V).reshape(B, L, D)
    out = ctx @ params["wo_t"] + params["bo"][0]
    out = out + x
    mean = out.mean(-1, keepdims=True)
    var = ((out - mean) ** 2).mean(-1, keepdims=True)
    out = (out - mean) / jnp.sqrt(var + 1e-5)
    return out * params["ln_g"][0] + params["ln_b"][0]


def init_params(key, dim_model):
    ks = jax.random.split(key, 8)
    bound = 1.0 / (dim_model ** 0.5)

    def lin(kw, kb):
        # PyTorch nn.Linear weight is [out, in]; store transposed [in, out].
        w = jax.random.uniform(kw, (dim_model, dim_model), jnp.float32, -bound, bound)
        b = jax.random.uniform(kb, (1, dim_model), jnp.float32, -bound, bound)
        return w.T, b

    wq_t, bq = lin(ks[0], ks[1])
    wk_t, bk = lin(ks[2], ks[3])
    wv_t, bv = lin(ks[4], ks[5])
    wo_t, bo = lin(ks[6], ks[7])
    return dict(
        wq_t=wq_t, bq=bq, wk_t=wk_t, bk=bk, wv_t=wv_t, bv=bv,
        wo_t=wo_t, bo=bo,
        ln_g=jnp.ones((1, dim_model), jnp.float32),
        ln_b=jnp.zeros((1, dim_model), jnp.float32),
    )


if __name__ == "__main__":
    B, L, dim_model, num_head = 2, 8, 32, 4

    key = jax.random.PRNGKey(0)
    kx, kp = jax.random.split(key)
    x = jax.random.normal(kx, (B, L, dim_model), jnp.float32)
    params = init_params(kp, dim_model)

    out = multi_head_attention_forward(x, params, num_head)
    out = jax.block_until_ready(out)

    ref = reference_forward(x, params, num_head)
    assert out.shape == (B, L, dim_model)
    # bf16 MXU inputs (f32 accumulation / softmax / LN) => bf16-level tolerance.
    assert jnp.allclose(out, ref, atol=5e-2, rtol=5e-2), "mismatch vs reference"

    print("KERNEL_OK")
</pallas_src>

<mosaic_0001>
module attributes {stable_mosaic.version = 11 : i64} {
  func.func @_qkv_kernel(%arg0: i32, %arg1: memref<16x32xbf16, #tpu.memory_space<vmem>>, %arg2: memref<32x32xbf16, #tpu.memory_space<vmem>>, %arg3: memref<1x32xf32, #tpu.memory_space<vmem>>, %arg4: memref<32x32xbf16, #tpu.memory_space<vmem>>, %arg5: memref<1x32xf32, #tpu.memory_space<vmem>>, %arg6: memref<32x32xbf16, #tpu.memory_space<vmem>>, %arg7: memref<1x32xf32, #tpu.memory_space<vmem>>, %arg8: memref<16x32xbf16, #tpu.memory_space<vmem>>, %arg9: memref<16x32xbf16, #tpu.memory_space<vmem>>, %arg10: memref<16x32xbf16, #tpu.memory_space<vmem>>) attributes {dimension_semantics = [#tpu.dimension_semantics<parallel>], iteration_bounds = array<i64: 1>, scalar_prefetch = 0 : i64, scratch_operands = 0 : i64, tpu.core_type = #tpu.core_type<tc>, window_params = [{transform_indices = @transform_0, window_bounds = array<i64: 16, 32>}, {pipeline_mode = #tpu.pipeline_mode<synchronous>, transform_indices = @transform_1, window_bounds = array<i64: 32, 32>}, {pipeline_mode = #tpu.pipeline_mode<synchronous>, transform_indices = @transform_2, window_bounds = array<i64: 1, 32>}, {pipeline_mode = #tpu.pipeline_mode<synchronous>, transform_indices = @transform_3, window_bounds = array<i64: 32, 32>}, {pipeline_mode = #tpu.pipeline_mode<synchronous>, transform_indices = @transform_4, window_bounds = array<i64: 1, 32>}, {pipeline_mode = #tpu.pipeline_mode<synchronous>, transform_indices = @transform_5, window_bounds = array<i64: 32, 32>}, {pipeline_mode = #tpu.pipeline_mode<synchronous>, transform_indices = @transform_6, window_bounds = array<i64: 1, 32>}, {transform_indices = @transform_7, window_bounds = array<i64: 16, 32>}, {transform_indices = @transform_8, window_bounds = array<i64: 16, 32>}, {transform_indices = @transform_9, window_bounds = array<i64: 16, 32>}]} {
    %c0 = arith.constant 0 : index
    %c0_0 = arith.constant 0 : index
    %0 = vector.load %arg1[%c0, %c0_0] : memref<16x32xbf16, #tpu.memory_space<vmem>>, vector<16x32xbf16>
    %c0_1 = arith.constant 0 : index
    %c0_2 = arith.constant 0 : index
    %1 = vector.load %arg2[%c0_1, %c0_2] : memref<32x32xbf16, #tpu.memory_space<vmem>>, vector<32x32xbf16>
    %cst = arith.constant dense<0.000000e+00> : vector<16x32xf32>
    %2 = tpu.matmul %0, %1, %cst {dimension_numbers = #tpu.dot_dimension_numbers<[1], [0], [0], [1], [0, 0, 1, 1], [], []>} : vector<16x32xbf16>, vector<32x32xbf16>, vector<16x32xf32> -> vector<16x32xf32>
    %c0_3 = arith.constant 0 : index
    %c0_4 = arith.constant 0 : index
    %3 = vector.load %arg3[%c0_3, %c0_4] : memref<1x32xf32, #tpu.memory_space<vmem>>, vector<1x32xf32>
    %4 = vector.broadcast %3 : vector<1x32xf32> to vector<16x32xf32>
    %5 = arith.addf %2, %4 : vector<16x32xf32>
    %6 = arith.truncf %5 : vector<16x32xf32> to vector<16x32xbf16>
    %c0_5 = arith.constant 0 : index
    %c0_6 = arith.constant 0 : index
    %7 = vector.load %arg8[%c0_5, %c0_6] : memref<16x32xbf16, #tpu.memory_space<vmem>>, vector<16x32xbf16>
    tpu.vector_store %arg8[%c0_5, %c0_6], %6 {strides = array<i32>} : memref<16x32xbf16, #tpu.memory_space<vmem>>, vector<16x32xbf16>,
    %c0_7 = arith.constant 0 : index
    %c0_8 = arith.constant 0 : index
    %8 = vector.load %arg4[%c0_7, %c0_8] : memref<32x32xbf16, #tpu.memory_space<vmem>>, vector<32x32xbf16>
    %cst_9 = arith.constant dense<0.000000e+00> : vector<16x32xf32>
    %9 = tpu.matmul %0, %8, %cst_9 {dimension_numbers = #tpu.dot_dimension_numbers<[1], [0], [0], [1], [0, 0, 1, 1], [], []>} : vector<16x32xbf16>, vector<32x32xbf16>, vector<16x32xf32> -> vector<16x32xf32>
    %c0_10 = arith.constant 0 : index
    %c0_11 = arith.constant 0 : index
    %10 = vector.load %arg5[%c0_10, %c0_11] : memref<1x32xf32, #tpu.memory_space<vmem>>, vector<1x32xf32>
    %11 = vector.broadcast %10 : vector<1x32xf32> to vector<16x32xf32>
    %12 = arith.addf %9, %11 : vector<16x32xf32>
    %13 = arith.truncf %12 : vector<16x32xf32> to vector<16x32xbf16>
    %c0_12 = arith.constant 0 : index
    %c0_13 = arith.constant 0 : index
    %14 = vector.load %arg9[%c0_12, %c0_13] : memref<16x32xbf16, #tpu.memory_space<vmem>>, vector<16x32xbf16>
    tpu.vector_store %arg9[%c0_12, %c0_13], %13 {strides = array<i32>} : memref<16x32xbf16, #tpu.memory_space<vmem>>, vector<16x32xbf16>,
    %c0_14 = arith.constant 0 : index
    %c0_15 = arith.constant 0 : index
    %15 = vector.load %arg6[%c0_14, %c0_15] : memref<32x32xbf16, #tpu.memory_space<vmem>>, vector<32x32xbf16>
    %cst_16 = arith.constant dense<0.000000e+00> : vector<16x32xf32>
    %16 = tpu.matmul %0, %15, %cst_16 {dimension_numbers = #tpu.dot_dimension_numbers<[1], [0], [0], [1], [0, 0, 1, 1], [], []>} : vector<16x32xbf16>, vector<32x32xbf16>, vector<16x32xf32> -> vector<16x32xf32>
    %c0_17 = arith.constant 0 : index
    %c0_18 = arith.constant 0 : index
    %17 = vector.load %arg7[%c0_17, %c0_18] : memref<1x32xf32, #tpu.memory_space<vmem>>, vector<1x32xf32>
    %18 = vector.broadcast %17 : vector<1x32xf32> to vector<16x32xf32>
    %19 = arith.addf %16, %18 : vector<16x32xf32>
    %20 = arith.truncf %19 : vector<16x32xf32> to vector<16x32xbf16>
    %c0_19 = arith.constant 0 : index
    %c0_20 = arith.constant 0 : index
    %21 = vector.load %arg10[%c0_19, %c0_20] : memref<16x32xbf16, #tpu.memory_space<vmem>>, vector<16x32xbf16>
    tpu.vector_store %arg10[%c0_19, %c0_20], %20 {strides = array<i32>} : memref<16x32xbf16, #tpu.memory_space<vmem>>, vector<16x32xbf16>,
    return
  }
  func.func @transform_0(%arg0: i32) -> (i32, i32) {
    %c0_i32 = arith.constant 0 : i32
    %c0_i32_0 = arith.constant 0 : i32
    return %arg0, %c0_i32 : i32, i32
  }
  func.func @transform_1(%arg0: i32) -> (i32, i32) {
    %c0_i32 = arith.constant 0 : i32
    %c0_i32_0 = arith.constant 0 : i32
    %c0_i32_1 = arith.constant 0 : i32
    return %c0_i32, %c0_i32_0 : i32, i32
  }
  func.func @transform_2(%arg0: i32) -> (i32, i32) {
    %c0_i32 = arith.constant 0 : i32
    %c0_i32_0 = arith.constant 0 : i32
    %c0_i32_1 = arith.constant 0 : i32
    return %c0_i32, %c0_i32_0 : i32, i32
  }
  func.func @transform_3(%arg0: i32) -> (i32, i32) {
    %c0_i32 = arith.constant 0 : i32
    %c0_i32_0 = arith.constant 0 : i32
    %c0_i32_1 = arith.constant 0 : i32
    return %c0_i32, %c0_i32_0 : i32, i32
  }
  func.func @transform_4(%arg0: i32) -> (i32, i32) {
    %c0_i32 = arith.constant 0 : i32
    %c0_i32_0 = arith.constant 0 : i32
    %c0_i32_1 = arith.constant 0 : i32
    return %c0_i32, %c0_i32_0 : i32, i32
  }
  func.func @transform_5(%arg0: i32) -> (i32, i32) {
    %c0_i32 = arith.constant 0 : i32
    %c0_i32_0 = arith.constant 0 : i32
    %c0_i32_1 = arith.constant 0 : i32
    return %c0_i32, %c0_i32_0 : i32, i32
  }
  func.func @transform_6(%arg0: i32) -> (i32, i32) {
    %c0_i32 = arith.constant 0 : i32
    %c0_i32_0 = arith.constant 0 : i32
    %c0_i32_1 = arith.constant 0 : i32
    return %c0_i32, %c0_i32_0 : i32, i32
  }
  func.func @transform_7(%arg0: i32) -> (i32, i32) {
    %c0_i32 = arith.constant 0 : i32
    %c0_i32_0 = arith.constant 0 : i32
    return %arg0, %c0_i32 : i32, i32
  }
  func.func @transform_8(%arg0: i32) -> (i32, i32) {
    %c0_i32 = arith.constant 0 : i32
    %c0_i32_0 = arith.constant 0 : i32
    return %arg0, %c0_i32 : i32, i32
  }
  func.func @transform_9(%arg0: i32) -> (i32, i32) {
    %c0_i32 = arith.constant 0 : i32
    %c0_i32_0 = arith.constant 0 : i32
    return %arg0, %c0_i32 : i32, i32
  }
}

</mosaic_0001>

<llo_original>
// kernel: tpu_custom_call.1
$region0: #{tpu_custom_call.1}
  #allocation0 [shape = 'u32[]', space=smem, size = 0x4, offset = 0x4, fixed_abs, tag = 'smem constant byte address 0x4 - core index']
  #allocation1 [shape = 'u32[144,128]{1,0:T(1,128)}', space=vmem, size = 0x12000, scoped, tag = 'internal scratch']
  %s0 = inlined_call_operand.hbm [shape: bf16[16,32], index: 0, kind: input, shape index: {}]
  %s1 = inlined_call_operand.hbm [shape: bf16[32,32], index: 1, kind: input, shape index: {}]
  %s2 = inlined_call_operand.vmem [shape: f32[1,32], index: 2, kind: input, shape index: {}]
  %s3 = inlined_call_operand.hbm [shape: bf16[32,32], index: 3, kind: input, shape index: {}]
  %s4 = inlined_call_operand.vmem [shape: f32[1,32], index: 4, kind: input, shape index: {}]
  %s5 = inlined_call_operand.hbm [shape: bf16[32,32], index: 5, kind: input, shape index: {}]
  %s6 = inlined_call_operand.vmem [shape: f32[1,32], index: 6, kind: input, shape index: {}]
  %s7 = inlined_call_operand.hbm [shape: bf16[16,32], index: 7, kind: output, shape index: {0}]
  %s8 = inlined_call_operand.hbm [shape: bf16[16,32], index: 8, kind: output, shape index: {1}]
  %s9 = inlined_call_operand.hbm [shape: bf16[16,32], index: 9, kind: output, shape index: {2}]
  %10 = xla_tuple %s7, %s8, %s9
  %s11 = sld [smem:[#allocation0]]
  $region70: #{tpu_custom_call.1} parent=0
    _
  %s13 = ssub.s32 1, %s11
  %s14 = scalar_select 0, %s13, %s11
  $region1: #{tpu_custom_call.1} parent=0
    #allocation2 [shape = 'u8[4096]{0}', space=vmem, size = 0x1000, scoped, tag = 'input window, operand 0, single buffered']
    #allocation3 [shape = 's32[1]{0}', space=sflag, size = 0x4, scoped, tag = 'scoped memory for tpu_custom_call.1']
    #allocation4 [shape = 's32[1]{0}', space=sflag, size = 0x4, scoped, tag = 'scoped memory for tpu_custom_call.1']
    #allocation5 [shape = 'u8[8192]{0}', space=vmem, size = 0x2000, scoped, tag = 'input window, operand 1, single buffered']
    #allocation6 [shape = 's32[1]{0}', space=sflag, size = 0x4, scoped, tag = 'scoped memory for tpu_custom_call.1']
    #allocation7 [shape = 'u8[8192]{0}', space=vmem, size = 0x2000, scoped, tag = 'input window, operand 3, single buffered']
    #allocation8 [shape = 'u8[8192]{0}', space=vmem, size = 0x2000, scoped, tag = 'input window, operand 5, single buffered']
    #allocation9 [shape = 's32[1]{0}', space=sflag, size = 0x4, scoped, tag = 'scoped memory for tpu_custom_call.1']
    #allocation10 [shape = 'u8[4096]{0}', space=vmem, size = 0x1000, scoped, tag = 'output window, operand 0, single buffered']
    #allocation11 [shape = 'u8[4096]{0}', space=vmem, size = 0x1000, scoped, tag = 'output window, operand 1, single buffered']
    #allocation12 [shape = 's32[1]{0}', space=sflag, size = 0x4, scoped, tag = 'scoped memory for tpu_custom_call.1']
    #allocation13 [shape = 'u8[4096]{0}', space=vmem, size = 0x1000, scoped, tag = 'output window, operand 2, single buffered']
    %15 = vsyncpa [#allocation3], 0
    %16 = vsyncpa [#allocation6], 0
    %17 = vsyncpa [#allocation9], 0
    %18 = vsyncpa [#allocation4], 0
    %19 = vsyncpa [#allocation12], 0
    // Predicated region
    $region2: #{tpu_custom_call.1} parent=1 // pred_check
      _
    $region3: #{tpu_custom_call.1} parent=1 // pred_check_branch
      %21 = sbr.rel (0) target = $region5
    $region4: #{tpu_custom_call.1} parent=1 // pred_region
      %s23 = ssub.s32 128, 128
      %24 = vsyncadd [#allocation3], %s23
      %s25 = sshll.u32 [#allocation2], 4
      %s26 = int_to_ptr.vmem [resolvable:$true] %s25
      %31 = dma.hbm_to_vmem [thread:$0]  %s0, 128, %s26, [#allocation3], 64, 64, 4
    $region5: #{tpu_custom_call.1} parent=1 // pred_fallthru
      _
    // Predicated region
    $region6: #{tpu_custom_call.1} parent=1 // pred_check
      _
    $region7: #{tpu_custom_call.1} parent=1 // pred_check_branch
      %33 = sbr.rel (0) target = $region9
    $region8: #{tpu_custom_call.1} parent=1 // pred_region
      %s35 = ssub.s32 256, 256
      %36 = vsyncadd [#allocation6], %s35
      %s37 = sshll.u32 [#allocation5], 4
      %s38 = int_to_ptr.vmem [resolvable:$true] %s37
      %43 = dma.hbm_to_vmem [thread:$0]  %s1, 256, %s38, [#allocation6], 64, 64, 4
    $region9: #{tpu_custom_call.1} parent=1 // pred_fallthru
      _
    // Predicated region
    $region10: #{tpu_custom_call.1} parent=1 // pred_check
      _
    $region11: #{tpu_custom_call.1} parent=1 // pred_check_branch
      %45 = sbr.rel (0) target = $region13
    $region12: #{tpu_custom_call.1} parent=1 // pred_region
      _
    $region13: #{tpu_custom_call.1} parent=1 // pred_fallthru
      _
    // Predicated region
    $region14: #{tpu_custom_call.1} parent=1 // pred_check
      _
    $region15: #{tpu_custom_call.1} parent=1 // pred_check_branch
      %47 = sbr.rel (0) target = $region17
    $region16: #{tpu_custom_call.1} parent=1 // pred_region
      %s49 = ssub.s32 256, 256
      %50 = vsyncadd [#allocation6], %s49
      %s51 = sshll.u32 [#allocation7], 4
      %s52 = int_to_ptr.vmem [resolvable:$true] %s51
      %57 = dma.hbm_to_vmem [thread:$0]  %s3, 256, %s52, [#allocation6], 64, 64, 4
    $region17: #{tpu_custom_call.1} parent=1 // pred_fallthru
      _
    // Predicated region
    $region18: #{tpu_custom_call.1} parent=1 // pred_check
      _
    $region19: #{tpu_custom_call.1} parent=1 // pred_check_branch
      %59 = sbr.rel (0) target = $region21
    $region20: #{tpu_custom_call.1} parent=1 // pred_region
      _
    $region21: #{tpu_custom_call.1} parent=1 // pred_fallthru
      _
    // Predicated region
    $region22: #{tpu_custom_call.1} parent=1 // pred_check
      _
    $region23: #{tpu_custom_call.1} parent=1 // pred_check_branch
      %61 = sbr.rel (0) target = $region25
    $region24: #{tpu_custom_call.1} parent=1 // pred_region
      %s63 = ssub.s32 256, 256
      %64 = vsyncadd [#allocation9], %s63
      %s65 = sshll.u32 [#allocation8], 4
      %s66 = int_to_ptr.vmem [resolvable:$true] %s65
      %71 = dma.hbm_to_vmem [thread:$0]  %s5, 256, %s66, [#allocation9], 64, 64, 4
    $region25: #{tpu_custom_call.1} parent=1 // pred_fallthru
      _
    // Predicated region
    $region26: #{tpu_custom_call.1} parent=1 // pred_check
      _
    $region27: #{tpu_custom_call.1} parent=1 // pred_check_branch
      %73 = sbr.rel (0) target = $region29
    $region28: #{tpu_custom_call.1} parent=1 // pred_region
      _
    $region29: #{tpu_custom_call.1} parent=1 // pred_fallthru
      _
    // Predicated region
    $region30: #{tpu_custom_call.1} parent=1 // pred_check
      _
    $region31: #{tpu_custom_call.1} parent=1 // pred_check_branch
      %75 = sbr.rel (0) target = $region33
    $region32: #{tpu_custom_call.1} parent=1 // pred_region
      %76 = dma.done [#allocation3], 128
    $region33: #{tpu_custom_call.1} parent=1 // pred_fallthru
      _
    // Predicated region
    $region34: #{tpu_custom_call.1} parent=1 // pred_check
      _
    $region35: #{tpu_custom_call.1} parent=1 // pred_check_branch
      %78 = sbr.rel (0) target = $region37
    $region36: #{tpu_custom_call.1} parent=1 // pred_region
      %79 = dma.done [#allocation6], 256
    $region37: #{tpu_custom_call.1} parent=1 // pred_fallthru
      _
    // Predicated region
    $region38: #{tpu_custom_call.1} parent=1 // pred_check
      _
    $region39: #{tpu_custom_call.1} parent=1 // pred_check_branch
      %81 = sbr.rel (0) target = $region41
    $region40: #{tpu_custom_call.1} parent=1 // pred_region
      %82 = dma.done [#allocation6], 256
    $region41: #{tpu_custom_call.1} parent=1 // pred_fallthru
      _
    // Predicated region
    $region42: #{tpu_custom_call.1} parent=1 // pred_check
      _
    $region43: #{tpu_custom_call.1} parent=1 // pred_check_branch
      %84 = sbr.rel (0) target = $region45
    $region44: #{tpu_custom_call.1} parent=1 // pred_region
      %85 = dma.done [#allocation9], 256
    $region45: #{tpu_custom_call.1} parent=1 // pred_fallthru
      _
    %v87 = vld [vmem:[#allocation2] sm:$0xf]
    %v88 = vld [vmem:[#allocation2 + $0x4] sm:$0xf]
    %v89 = vld [vmem:[#allocation5] sm:$0xf]
    %v90 = vld [vmem:[#allocation5 + $0x4] sm:$0xf]
    %v91 = vld [vmem:[#allocation5 + $0x8] sm:$0xf]
    %v92 = vld [vmem:[#allocation5 + $0xc] sm:$0xf]
    %v93 = vld [vmem:[%s2] sm:$0x1]
    %v95 = vlaneseq
    %v96 = vshrl.u32 %v95, 7
    %v97 = vsub.s32 0, %v96
    %v98 = vrot.slane %v93, %v97
    %v102 = vunpack.c.l.b16 %v87
    %v103 = vunpack.c.l.b16 %v88
    %v104 = vpack.c.b16 %v103, %v102
    %v109 = vunpack.c.l.b16 %v89
    %v110 = vunpack.c.l.b16 %v90
    %v111 = vunpack.c.l.b16 %v91
    %v112 = vunpack.c.l.b16 %v92
    %v113 = vpack.c.b16 %v110, %v109
    %v114 = vpack.c.b16 %v112, %v111
    %vm117 = vcmask 261120
    %v119 = vsel %vm117, %v104, 0
    %121 = vmatprep.subr.bf16.mxu0 0
    %122 = vmatpush1.bf16.msra.mxu0 0
    %123 = vmatprep.subr.bf16.mxu0 0
    %124 = vmatpush1.bf16.msra.mxu0 0
    %125 = vmatprep.subr.bf16.mxu0 0
    %126 = vmatpush1.bf16.msra.mxu0 0
    %127 = vmatprep.subr.bf16.mxu0 0
    %128 = vmatpush1.bf16.msra.mxu0 0
    %129 = vmatprep.subr.bf16.mxu0 0
    %130 = vmatpush1.bf16.msra.mxu0 0
    %131 = vmatprep.subr.bf16.mxu0 0
    %132 = vmatpush1.bf16.msra.mxu0 0
    %133 = vmatprep.subr.bf16.mxu0 0
    %134 = vmatpush1.bf16.msra.mxu0 %v114
    %135 = vmatprep.subr.bf16.mxu0 0
    %136 = vmatpush1.bf16.msra.mxu0 %v113
    %137 = vmatprep.subr.bf16.mxu0 0
    %138 = vmatpush2.bf16.msra.mxu0 0
    %139 = vmatprep.subr.bf16.mxu0 0
    %140 = vmatpush2.bf16.msra.mxu0 0
    %141 = vmatprep.subr.bf16.mxu0 0
    %142 = vmatpush2.bf16.msra.mxu0 0
    %143 = vmatprep.subr.bf16.mxu0 0
    %144 = vmatpush2.bf16.msra.mxu0 0
    %145 = vmatprep.subr.bf16.mxu0 0
    %146 = vmatpush2.bf16.msra.mxu0 0
    %147 = vmatprep.subr.bf16.mxu0 0
    %148 = vmatpush2.bf16.msra.mxu0 0
    %149 = vmatprep.subr.bf16.mxu0 0
    %150 = vmatpush2.bf16.msra.mxu0 0
    %151 = vmatprep.subr.bf16.mxu0 0
    %152 = vmatpush2.bf16.msra.mxu0 0
    %153 = vmatprep.mubr.bf16.mxu0 0
    %154 = vmatmul.mubr.bf16.gmra.mxu0 %v119
    %v155 = vpop.f32.mrf.mxu0
    %v156 = vadd.f32 %v98, %v155
    %v157 = vpop.f32.mrf.mxu0
    %v158 = vpop.f32.mrf.mxu0
    %v159 = vadd.f32 %v98, %v158
    %v160 = vpop.f32.mrf.mxu0
    %161 = vdwg.mxu0
    %v162 = vpack.c.bf16 %v159, %v156
    %v164 = vunpack.c.l.b16 %v162
    %v165 = vunpack.c.h.b16 %v162
    %v166 = vpack.c.b16 %v164, %v164
    %v167 = vpack.c.b16 %v165, %v165
    %vm170 = vcmask 257024
    %171 = vst.msk [vmem:[#allocation10] sm:$0xf] %vm170, %v166
    %172 = vst.msk [vmem:[#allocation10 + $0x4] sm:$0xf] %vm170, %v167
    %v173 = vld [vmem:[#allocation7] sm:$0xf]
    %v174 = vld [vmem:[#allocation7 + $0x4] sm:$0xf]
    %v175 = vld [vmem:[#allocation7 + $0x8] sm:$0xf]
    %v176 = vld [vmem:[#allocation7 + $0xc] sm:$0xf]
    %v177 = vld [vmem:[%s4] sm:$0x1]
    %v179 = vlaneseq
    %v180 = vshrl.u32 %v179, 7
    %v181 = vsub.s32 0, %v180
    %v182 = vrot.slane %v177, %v181
    %v188 = vunpack.c.l.b16 %v173
    %v189 = vunpack.c.l.b16 %v174
    %v190 = vunpack.c.l.b16 %v175
    %v191 = vunpack.c.l.b16 %v176
    %v192 = vpack.c.b16 %v189, %v188
    %v193 = vpack.c.b16 %v191, %v190
    %196 = vmatprep.subr.bf16.mxu0 0
    %197 = vmatpush1.bf16.msra.mxu0 0
    %198 = vmatprep.subr.bf16.mxu0 0
    %199 = vmatpush1.bf16.msra.mxu0 0
    %200 = vmatprep.subr.bf16.mxu0 0
    %201 = vmatpush1.bf16.msra.mxu0 0
    %202 = vmatprep.subr.bf16.mxu0 0
    %203 = vmatpush1.bf16.msra.mxu0 0
    %204 = vmatprep.subr.bf16.mxu0 0
    %205 = vmatpush1.bf16.msra.mxu0 0
    %206 = vmatprep.subr.bf16.mxu0 0
    %207 = vmatpush1.bf16.msra.mxu0 0
    %208 = vmatprep.subr.bf16.mxu0 0
    %209 = vmatpush1.bf16.msra.mxu0 %v193
    %210 = vmatprep.subr.bf16.mxu0 0
    %211 = vmatpush1.bf16.msra.mxu0 %v192
    %212 = vmatprep.subr.bf16.mxu0 0
    %213 = vmatpush2.bf16.msra.mxu0 0
    %214 = vmatprep.subr.bf16.mxu0 0
    %215 = vmatpush2.bf16.msra.mxu0 0
    %216 = vmatprep.subr.bf16.mxu0 0
    %217 = vmatpush2.bf16.msra.mxu0 0
    %218 = vmatprep.subr.bf16.mxu0 0
    %219 = vmatpush2.bf16.msra.mxu0 0
    %220 = vmatprep.subr.bf16.mxu0 0
    %221 = vmatpush2.bf16.msra.mxu0 0
    %222 = vmatprep.subr.bf16.mxu0 0
    %223 = vmatpush2.bf16.msra.mxu0 0
    %224 = vmatprep.subr.bf16.mxu0 0
    %225 = vmatpush2.bf16.msra.mxu0 0
    %226 = vmatprep.subr.bf16.mxu0 0
    %227 = vmatpush2.bf16.msra.mxu0 0
    %228 = vmatprep.mubr.bf16.mxu0 0
    %229 = vmatmul.mubr.bf16.gmra.mxu0 %v119
    %v230 = vpop.f32.mrf.mxu0
    %v231 = vadd.f32 %v182, %v230
    %v232 = vpop.f32.mrf.mxu0
    %v233 = vpop.f32.mrf.mxu0
    %v234 = vadd.f32 %v182, %v233
    %v235 = vpop.f32.mrf.mxu0
    %236 = vdwg.mxu0
    %v237 = vpack.c.bf16 %v234, %v231
    %v239 = vunpack.c.l.b16 %v237
    %v240 = vunpack.c.h.b16 %v237
    %v241 = vpack.c.b16 %v239, %v239
    %v242 = vpack.c.b16 %v240, %v240
    %245 = vst.msk [vmem:[#allocation11] sm:$0xf] %vm170, %v241
    %246 = vst.msk [vmem:[#allocation11 + $0x4] sm:$0xf] %vm170, %v242
    %v247 = vld [vmem:[#allocation8] sm:$0xf]
    %v248 = vld [vmem:[#allocation8 + $0x4] sm:$0xf]
    %v249 = vld [vmem:[#allocation8 + $0x8] sm:$0xf]
    %v250 = vld [vmem:[#allocation8 + $0xc] sm:$0xf]
    %v251 = vld [vmem:[%s6] sm:$0x1]
    %v253 = vlaneseq
    %v254 = vshrl.u32 %v253, 7
    %v255 = vsub.s32 0, %v254
    %v256 = vrot.slane %v251, %v255
    %v262 = vunpack.c.l.b16 %v247
    %v263 = vunpack.c.l.b16 %v248
    %v264 = vunpack.c.l.b16 %v249
    %v265 = vunpack.c.l.b16 %v250
    %v266 = vpack.c.b16 %v263, %v262
    %v267 = vpack.c.b16 %v265, %v264
    %270 = vmatprep.subr.bf16.mxu0 0
    %271 = vmatpush1.bf16.msra.mxu0 0
    %272 = vmatprep.subr.bf16.mxu0 0
    %273 = vmatpush1.bf16.msra.mxu0 0
    %274 = vmatprep.subr.bf16.mxu0 0
    %275 = vmatpush1.bf16.msra.mxu0 0
    %276 = vmatprep.subr.bf16.mxu0 0
    %277 = vmatpush1.bf16.msra.mxu0 0
    %278 = vmatprep.subr.bf16.mxu0 0
    %279 = vmatpush1.bf16.msra.mxu0 0
    %280 = vmatprep.subr.bf16.mxu0 0
    %281 = vmatpush1.bf16.msra.mxu0 0
    %282 = vmatprep.subr.bf16.mxu0 0
    %283 = vmatpush1.bf16.msra.mxu0 %v267
    %284 = vmatprep.subr.bf16.mxu0 0
    %285 = vmatpush1.bf16.msra.mxu0 %v266
    %286 = vmatprep.subr.bf16.mxu0 0
    %287 = vmatpush2.bf16.msra.mxu0 0
    %288 = vmatprep.subr.bf16.mxu0 0
    %289 = vmatpush2.bf16.msra.mxu0 0
    %290 = vmatprep.subr.bf16.mxu0 0
    %291 = vmatpush2.bf16.msra.mxu0 0
    %292 = vmatprep.subr.bf16.mxu0 0
    %293 = vmatpush2.bf16.msra.mxu0 0
    %294 = vmatprep.subr.bf16.mxu0 0
    %295 = vmatpush2.bf16.msra.mxu0 0
    %296 = vmatprep.subr.bf16.mxu0 0
    %297 = vmatpush2.bf16.msra.mxu0 0
    %298 = vmatprep.subr.bf16.mxu0 0
    %299 = vmatpush2.bf16.msra.mxu0 0
    %300 = vmatprep.subr.bf16.mxu0 0
    %301 = vmatpush2.bf16.msra.mxu0 0
    %302 = vmatprep.mubr.bf16.mxu0 0
    %303 = vmatmul.mubr.bf16.gmra.mxu0 %v119
    %v304 = vpop.f32.mrf.mxu0
    %v305 = vadd.f32 %v256, %v304
    %v306 = vpop.f32.mrf.mxu0
    %v307 = vpop.f32.mrf.mxu0
    %v308 = vadd.f32 %v256, %v307
    %v309 = vpop.f32.mrf.mxu0
    %310 = vdwg.mxu0
    %v311 = vpack.c.bf16 %v308, %v305
    %v313 = vunpack.c.l.b16 %v311
    %v314 = vunpack.c.h.b16 %v311
    %v315 = vpack.c.b16 %v313, %v313
    %v316 = vpack.c.b16 %v314, %v314
    %319 = vst.msk [vmem:[#allocation13] sm:$0xf] %vm170, %v315
    %320 = vst.msk [vmem:[#allocation13 + $0x4] sm:$0xf] %vm170, %v316
    // Predicated region
    $region46: #{tpu_custom_call.1} parent=1 // pred_check
      _
    $region47: #{tpu_custom_call.1} parent=1 // pred_check_branch
      %322 = sbr.rel (0) target = $region49
    $region48: #{tpu_custom_call.1} parent=1 // pred_region
      %s324 = ssub.s32 128, 128
      %325 = vsyncadd [#allocation4], %s324
      %s326 = sshll.u32 [#allocation10], 4
      %s327 = int_to_ptr.vmem [resolvable:$true] %s326
      %332 = dma.vmem_to_hbm [thread:$0]  %s327, 128, %s7, [#allocation4], 64, 64, 4
    $region49: #{tpu_custom_call.1} parent=1 // pred_fallthru
      _
    // Predicated region
    $region50: #{tpu_custom_call.1} parent=1 // pred_check
      _
    $region51: #{tpu_custom_call.1} parent=1 // pred_check_branch
      %334 = sbr.rel (0) target = $region53
    $region52: #{tpu_custom_call.1} parent=1 // pred_region
      %s336 = ssub.s32 128, 128
      %337 = vsyncadd [#allocation12], %s336
      %s338 = sshll.u32 [#allocation11], 4
      %s339 = int_to_ptr.vmem [resolvable:$true] %s338
      %344 = dma.vmem_to_hbm [thread:$0]  %s339, 128, %s8, [#allocation12], 64, 64, 4
    $region53: #{tpu_custom_call.1} parent=1 // pred_fallthru
      _
    // Predicated region
    $region54: #{tpu_custom_call.1} parent=1 // pred_check
      _
    $region55: #{tpu_custom_call.1} parent=1 // pred_check_branch
      %346 = sbr.rel (0) target = $region57
    $region56: #{tpu_custom_call.1} parent=1 // pred_region
      %s348 = ssub.s32 128, 128
      %349 = vsyncadd [#allocation12], %s348
      %s350 = sshll.u32 [#allocation13], 4
      %s351 = int_to_ptr.vmem [resolvable:$true] %s350
      %356 = dma.vmem_to_hbm [thread:$0]  %s351, 128, %s9, [#allocation12], 64, 64, 4
    $region57: #{tpu_custom_call.1} parent=1 // pred_fallthru
      _
    // Predicated region
    $region58: #{tpu_custom_call.1} parent=1 // pred_check
      _
    $region59: #{tpu_custom_call.1} parent=1 // pred_check_branch
      %358 = sbr.rel (0) target = $region61
    $region60: #{tpu_custom_call.1} parent=1 // pred_region
      %359 = dma.done [#allocation4], 128
    $region61: #{tpu_custom_call.1} parent=1 // pred_fallthru
      _
    // Predicated region
    $region62: #{tpu_custom_call.1} parent=1 // pred_check
      _
    $region63: #{tpu_custom_call.1} parent=1 // pred_check_branch
      %361 = sbr.rel (0) target = $region65
    $region64: #{tpu_custom_call.1} parent=1 // pred_region
      %362 = dma.done [#allocation12], 128
    $region65: #{tpu_custom_call.1} parent=1 // pred_fallthru
      _
    // Predicated region
    $region66: #{tpu_custom_call.1} parent=1 // pred_check
      _
    $region67: #{tpu_custom_call.1} parent=1 // pred_check_branch
      %364 = sbr.rel (0) target = $region69
    $region68: #{tpu_custom_call.1} parent=1 // pred_region
      %365 = dma.done [#allocation12], 128
    $region69: #{tpu_custom_call.1} parent=1 // pred_fallthru
      _
    %366 = vsyncpa [#allocation3], 1
    %367 = vsyncpa [#allocation6], 1
    %368 = vsyncpa [#allocation9], 1
    %369 = vsyncpa [#allocation4], 1
    %370 = vsyncpa [#allocation12], 1

</llo_original>
